<compile_context>
chip_gen: v6e
topology: v6e:2x2x1
jax: 0.10.0
libtpu: 0.0.40
codegen_flags: <defaults>
</compile_context>

<pallas_src>
import jax
import jax.numpy as jnp
from jax.experimental import pallas as pl
from jax.experimental.pallas import tpu as pltpu

EPS = 1e-5


def _entity_embed_kernel(x_ref, e_ref, w_ref, c_ref, o_ref):
    # x_ref: (1, b_blk, f_blk)   x values for this (feature-block, batch-block)
    # e_ref: (f_blk, f_blk*D)    0/1 expansion matrix, E[fl, fl*D + d] = 1
    # w_ref: (1, f_blk*D)        (gamma_f / std_f) * W[f, d], flattened lane-dense
    # c_ref: (1, f_blk*D)        beta_f - (gamma_f / std_f) * mean_f, repeated D times
    # o_ref: (b_blk, f_blk*D)    lane-dense output block of the (B, F*D) slab
    x = x_ref[0]                                   # (b_blk, f_blk), f32
    e = e_ref[...]                                 # (f_blk, span),  f32 (0/1)

    # Exact lane-expansion of x on the MXU: split x into bf16-representable
    # pieces so x_hi/x_mid/x_lo @ E is exact even if the MXU rounds f32 -> bf16.
    x_hi = x.astype(jnp.bfloat16).astype(jnp.float32)
    r = x - x_hi
    x_mid = r.astype(jnp.bfloat16).astype(jnp.float32)
    x_lo = r - x_mid
    xexp = (jnp.dot(x_hi, e, preferred_element_type=jnp.float32)
            + jnp.dot(x_mid, e, preferred_element_type=jnp.float32)
            + jnp.dot(x_lo, e, preferred_element_type=jnp.float32))   # (b_blk, span)

    # Pure scale-and-shift stream (broadcast over the b_blk sublanes).
    o_ref[...] = (xexp * w_ref[...] + c_ref[...]).astype(o_ref.dtype)


def _pick_f_block(F, D, max_f=32):
    """Feature-block size: keep the expansion matmul cheap and the lane span
    (f_blk * D) either 128-aligned or covering all of F."""
    if F <= max_f:
        return F
    for f_blk in range(max_f, 0, -1):
        if F % f_blk == 0 and (f_blk * D) % 128 == 0:
            return f_blk
    return F


def _pick_b_block(B, span, target_bytes=2 * 1024 * 1024):
    """Batch-block size: ~target_bytes f32 output tile, multiple of 8 (or == B)."""
    cap = max(1, target_bytes // (span * 4))
    if B <= cap:
        return B
    for b_blk in range(min(B, cap), 0, -1):
        if B % b_blk == 0 and (b_blk % 8 == 0 or b_blk == B):
            return b_blk
    return B


def entity_embed(x, W, gamma, beta, *, f_block=None, b_block=None):
    """x: (B, F), W: (F, D) stacked per-feature Linear(1, D) weights,
    gamma/beta: (F,) BatchNorm affine params.  Returns (B, F, D)."""
    B, F = x.shape
    Fw, D = W.shape
    assert Fw == F and gamma.shape == (F,) and beta.shape == (F,)

    x32 = x.astype(jnp.float32)
    W32 = W.astype(jnp.float32)

    # ---- Factorised training-mode BatchNorm statistics (tiny, done in XLA). ----
    mx = jnp.mean(x32, axis=0)                        # (F,)
    vx = jnp.mean((x32 - mx[None, :]) ** 2, axis=0)   # (F,) biased
    mw = jnp.mean(W32, axis=1)                        # (F,)
    vw = jnp.mean((W32 - mw[:, None]) ** 2, axis=1)   # (F,) biased
    mean = mx * mw
    var = vx * vw + vx * mw * mw + mx * mx * vw       # cancellation-free
    a = gamma.astype(jnp.float32) * jax.lax.rsqrt(var + EPS)    # (F,)
    c = beta.astype(jnp.float32) - a * mean                     # (F,)

    # ---- Block sizes / grid. ----
    f_blk = f_block if f_block is not None else _pick_f_block(F, D)
    assert F % f_blk == 0
    span = f_blk * D
    nf = F // f_blk
    assert nf == 1 or span % 128 == 0, "feature-block span must be lane-aligned"
    b_blk = b_block if b_block is not None else _pick_b_block(B, span)
    assert B % b_blk == 0 and (b_blk % 8 == 0 or b_blk == B)
    nb = B // b_blk

    # ---- Lane-dense packed parameters (tiny O(F*D) precompute). ----
    w_flat = (a[:, None] * W32).reshape(1, F * D)                      # (1, F*D)
    c_flat = jnp.broadcast_to(c[:, None], (F, D)).reshape(1, F * D)    # (1, F*D)
    # x grouped by feature block: xg[j, b, fl] = x[b, j*f_blk + fl]
    xg = x32.reshape(B, nf, f_blk).transpose(1, 0, 2)                  # (nf, B, f_blk)
    # 0/1 expansion matrix (same for every feature block; fetched once).
    rows = jnp.arange(f_blk, dtype=jnp.int32)[:, None]
    cols = jnp.arange(span, dtype=jnp.int32)[None, :] // D
    e_mat = (cols == rows).astype(jnp.float32)                         # (f_blk, span)

    cost = pl.CostEstimate(
        flops=2 * B * F * D,
        transcendentals=0,
        bytes_accessed=4 * (B * F + 2 * F * D + B * F * D))

    out2 = pl.pallas_call(
        _entity_embed_kernel,
        out_shape=jax.ShapeDtypeStruct((B, F * D), x.dtype),
        grid_spec=pltpu.PrefetchScalarGridSpec(
            num_scalar_prefetch=0,
            grid=(nf, nb),                      # batch axis innermost
            in_specs=[
                pl.BlockSpec((1, b_blk, f_blk), lambda ji, bi: (ji, bi, 0)),  # x
                pl.BlockSpec((f_blk, span),     lambda ji, bi: (0, 0)),       # E
                pl.BlockSpec((1, span),         lambda ji, bi: (0, ji)),      # scale
                pl.BlockSpec((1, span),         lambda ji, bi: (0, ji)),      # shift
            ],
            out_specs=pl.BlockSpec((b_blk, span), lambda ji, bi: (bi, ji)),
        ),
        compiler_params=pltpu.CompilerParams(
            dimension_semantics=("parallel", "parallel"),
            vmem_limit_bytes=32 * 1024 * 1024),
        cost_estimate=cost,
    )(xg, e_mat, w_flat, c_flat)

    return out2.reshape(B, F, D)      # free row-major reshape


def entity_embed_ref(x, W, gamma, beta):
    # Pure-JAX reference of the PyTorch forward (training-mode BatchNorm1d).
    y = x[:, :, None] * W[None, :, :]                              # (B, F, D)
    mean = jnp.mean(y, axis=(0, 2), keepdims=True)
    var = jnp.mean((y - mean) ** 2, axis=(0, 2), keepdims=True)    # biased
    return (gamma[None, :, None] * (y - mean) / jnp.sqrt(var + EPS)
            + beta[None, :, None])


if __name__ == "__main__":
    # Module config: input_shape[-1] = F features, ee_dim = D.
    B, F, D = 64, 16, 32

    key = jax.random.PRNGKey(0)
    kx, kw, kg, kb = jax.random.split(key, 4)

    x = jax.random.normal(kx, (B, F), dtype=jnp.float32)
    # F independent nn.Linear(1, D, bias=False) weights stacked into (F, D);
    # PyTorch init for fan_in=1 is U(-1, 1).
    W = jax.random.uniform(kw, (F, D), dtype=jnp.float32, minval=-1.0, maxval=1.0)
    gamma = 1.0 + 0.1 * jax.random.normal(kg, (F,), dtype=jnp.float32)
    beta = 0.1 * jax.random.normal(kb, (F,), dtype=jnp.float32)

    ref = entity_embed_ref(x, W, gamma, beta)

    # Explicit small blocks to exercise the multi-block grid path (grid = (2, 4)).
    out = entity_embed(x, W, gamma, beta, f_block=8, b_block=16)
    out = jax.block_until_ready(out)
    assert out.shape == (B, F, D)
    assert jnp.allclose(out, ref, rtol=1e-5, atol=1e-5), (
        float(jnp.max(jnp.abs(out - ref))))

    # Auto-tiled path (single big lane-dense block for this small problem).
    out2 = jax.block_until_ready(entity_embed(x, W, gamma, beta))
    assert jnp.allclose(out2, ref, rtol=1e-5, atol=1e-5), (
        float(jnp.max(jnp.abs(out2 - ref))))

    print("KERNEL_OK")
</pallas_src>

<mosaic_0001>
module attributes {stable_mosaic.version = 11 : i64} {
  func.func @_entity_embed_kernel(%arg0: i32, %arg1: i32, %arg2: memref<1x16x8xf32, #tpu.memory_space<vmem>>, %arg3: memref<8x256xf32, #tpu.memory_space<vmem>>, %arg4: memref<1x256xf32, #tpu.memory_space<vmem>>, %arg5: memref<1x256xf32, #tpu.memory_space<vmem>>, %arg6: memref<16x256xf32, #tpu.memory_space<vmem>>) attributes {dimension_semantics = [#tpu.dimension_semantics<parallel>, #tpu.dimension_semantics<parallel>], iteration_bounds = array<i64: 2, 4>, scalar_prefetch = 0 : i64, scratch_operands = 0 : i64, tpu.core_type = #tpu.core_type<tc>, window_params = [{transform_indices = @transform_0, window_bounds = array<i64: 1, 16, 8>}, {pipeline_mode = #tpu.pipeline_mode<synchronous>, transform_indices = @transform_1, window_bounds = array<i64: 8, 256>}, {transform_indices = @transform_2, window_bounds = array<i64: 1, 256>}, {transform_indices = @transform_3, window_bounds = array<i64: 1, 256>}, {transform_indices = @transform_4, window_bounds = array<i64: 16, 256>}]} {
    %c0 = arith.constant 0 : index
    %c0_0 = arith.constant 0 : index
    %c0_1 = arith.constant 0 : index
    %0 = vector.load %arg2[%c0, %c0_0, %c0_1] : memref<1x16x8xf32, #tpu.memory_space<vmem>>, vector<1x16x8xf32>
    %1 = vector.shape_cast %0 : vector<1x16x8xf32> to vector<16x8xf32>
    %c0_2 = arith.constant 0 : index
    %c0_3 = arith.constant 0 : index
    %2 = vector.load %arg3[%c0_2, %c0_3] : memref<8x256xf32, #tpu.memory_space<vmem>>, vector<8x256xf32>
    %3 = arith.truncf %1 : vector<16x8xf32> to vector<16x8xbf16>
    %4 = arith.extf %3 : vector<16x8xbf16> to vector<16x8xf32>
    %5 = arith.subf %1, %4 : vector<16x8xf32>
    %6 = arith.truncf %5 : vector<16x8xf32> to vector<16x8xbf16>
    %7 = arith.extf %6 : vector<16x8xbf16> to vector<16x8xf32>
    %8 = arith.subf %5, %7 : vector<16x8xf32>
    %cst = arith.constant dense<0.000000e+00> : vector<16x256xf32>
    %9 = tpu.matmul %4, %2, %cst {dimension_numbers = #tpu.dot_dimension_numbers<[1], [0], [0], [1], [0, 0, 1, 1], [], []>} : vector<16x8xf32>, vector<8x256xf32>, vector<16x256xf32> -> vector<16x256xf32>
    %cst_4 = arith.constant dense<0.000000e+00> : vector<16x256xf32>
    %10 = tpu.matmul %7, %2, %cst_4 {dimension_numbers = #tpu.dot_dimension_numbers<[1], [0], [0], [1], [0, 0, 1, 1], [], []>} : vector<16x8xf32>, vector<8x256xf32>, vector<16x256xf32> -> vector<16x256xf32>
    %11 = arith.addf %9, %10 : vector<16x256xf32>
    %cst_5 = arith.constant dense<0.000000e+00> : vector<16x256xf32>
    %12 = tpu.matmul %8, %2, %cst_5 {dimension_numbers = #tpu.dot_dimension_numbers<[1], [0], [0], [1], [0, 0, 1, 1], [], []>} : vector<16x8xf32>, vector<8x256xf32>, vector<16x256xf32> -> vector<16x256xf32>
    %13 = arith.addf %11, %12 : vector<16x256xf32>
    %c0_6 = arith.constant 0 : index
    %c0_7 = arith.constant 0 : index
    %14 = vector.load %arg4[%c0_6, %c0_7] : memref<1x256xf32, #tpu.memory_space<vmem>>, vector<1x256xf32>
    %15 = vector.broadcast %14 : vector<1x256xf32> to vector<16x256xf32>
    %16 = arith.mulf %13, %15 : vector<16x256xf32>
    %c0_8 = arith.constant 0 : index
    %c0_9 = arith.constant 0 : index
    %17 = vector.load %arg5[%c0_8, %c0_9] : memref<1x256xf32, #tpu.memory_space<vmem>>, vector<1x256xf32>
    %18 = vector.broadcast %17 : vector<1x256xf32> to vector<16x256xf32>
    %19 = arith.addf %16, %18 : vector<16x256xf32>
    %c0_10 = arith.constant 0 : index
    %c0_11 = arith.constant 0 : index
    %20 = vector.load %arg6[%c0_10, %c0_11] : memref<16x256xf32, #tpu.memory_space<vmem>>, vector<16x256xf32>
    tpu.vector_store %arg6[%c0_10, %c0_11], %19 {strides = array<i32>} : memref<16x256xf32, #tpu.memory_space<vmem>>, vector<16x256xf32>,
    return
  }
  func.func @transform_0(%arg0: i32, %arg1: i32) -> (i32, i32, i32) {
    %c0_i32 = arith.constant 0 : i32
    %c0_i32_0 = arith.constant 0 : i32
    return %arg0, %arg1, %c0_i32 : i32, i32, i32
  }
  func.func @transform_1(%arg0: i32, %arg1: i32) -> (i32, i32) {
    %c0_i32 = arith.constant 0 : i32
    %c0_i32_0 = arith.constant 0 : i32
    %c0_i32_1 = arith.constant 0 : i32
    return %c0_i32, %c0_i32_0 : i32, i32
  }
  func.func @transform_2(%arg0: i32, %arg1: i32) -> (i32, i32) {
    %c0_i32 = arith.constant 0 : i32
    %c0_i32_0 = arith.constant 0 : i32
    return %c0_i32, %arg0 : i32, i32
  }
  func.func @transform_3(%arg0: i32, %arg1: i32) -> (i32, i32) {
    %c0_i32 = arith.constant 0 : i32
    %c0_i32_0 = arith.constant 0 : i32
    return %c0_i32, %arg0 : i32, i32
  }
  func.func @transform_4(%arg0: i32, %arg1: i32) -> (i32, i32) {
    %c0_i32 = arith.constant 0 : i32
    return %arg1, %arg0 : i32, i32
  }
}

</mosaic_0001>

<llo_original>
// kernel: tpu_custom_call.1
$region0: #{tpu_custom_call.1}
  #allocation0 [shape = 'u32[]', space=smem, size = 0x4, offset = 0x4, fixed_abs, tag = 'smem constant byte address 0x4 - core index']
  #allocation1 [shape = 'u32[144,128]{1,0:T(1,128)}', space=vmem, size = 0x12000, scoped, tag = 'internal scratch']
  %s0 = inlined_call_operand.vmem [shape: f32[2,64,8], index: 0, kind: input, shape index: {}]
  %s1 = inlined_call_operand.vmem [shape: f32[8,256], index: 1, kind: input, shape index: {}]
  %s2 = inlined_call_operand.vmem [shape: f32[1,512], index: 2, kind: input, shape index: {}]
  %s3 = inlined_call_operand.vmem [shape: f32[1,512], index: 3, kind: input, shape index: {}]
  %s4 = inlined_call_operand.hbm [shape: f32[64,512], index: 4, kind: output, shape index: {}]
  %s5 = sld [smem:[#allocation0]]
  $region49: #{tpu_custom_call.1} parent=0
    _
  %s7 = ssub.s32 1, %s5
  %s8 = scalar_select 0, %s7, %s5
  $region1: #{tpu_custom_call.1} parent=0
    #allocation2 [shape = 'u8[32768]{0}', space=vmem, size = 0x8000, scoped, tag = 'output window, operand 0']
    #allocation3 [shape = 's32[2]{0}', space=sflag, size = 0x8, scoped, tag = 'scoped memory for tpu_custom_call.1']
    %9 = vsyncpa [#allocation3], 0
    %s10 = scalar_lea.sflag [#allocation3], 1
    %11 = vsyncpa %s10, 0
    loop: start=0, step=1, limit=10
    $region2: #{tpu_custom_call.1} parent=1 // loop_pre_header
      _
    $region3: #{tpu_custom_call.1} parent=1 // loop_header
      %s13 = sphi 0, %s17
      %p14 = scmp.ge.s32.totalorder %s13, 10
      %s20 = sphi 0, %s32
      %s21 = sphi 0, %s28
      %s22 = sphi 0, %s20
      %s23 = sphi 0, %s21
      %s24 = sphi 0, %s22
      %s25 = sphi 0, %s23
      %s37 = sphi 0, %s39
      %s40 = sphi 0, %s37
      %s41 = sphi 0, %s40
      %s57 = sphi 0, %s41
      %s61 = sphi 0, %s61
      %s63 = sphi 0, %s61
      %s64 = sphi 0, %s63
      %s78 = sphi 0, %s64
      %s84 = sphi 0, %s86
      %s87 = sphi 0, %s84
      %s88 = sphi 0, %s87
      %s104 = sphi 0, %s88
      %s110 = sphi 0, %s112
      %s113 = sphi 0, %s110
      %s114 = sphi 0, %s113
      %s130 = sphi 0, %s114
      %s138 = sphi 0, %s140
      %s141 = sphi 0, %s138
      %s142 = sphi 0, %s141
      %s158 = sphi 0, %s142
    $region4: #{tpu_custom_call.1} parent=1 // loop_header_branch
      %16 = sbr.rel (%p14) target = $region8
    $region5: #{tpu_custom_call.1} parent=1 // loop_body
      %s18 = ssub.s32 %s13, 1
      %s19 = ssub.s32 %s13, 2
      %s26 = sadd.s32 1, %s21
      %p27 = scmp.ge.s32.totalorder %s26, 4
      %s28 = scalar_select %p27, 0, %s26
      %s29 = sadd.s32 1, %s20
      %s30 = scalar_select %p27, %s29, %s20
      %p31 = scmp.ge.s32.totalorder %s30, 2
      %s32 = scalar_select %p31, 0, %s30
      %s33 = ssub.s32 %s20, %s32
      %s34 = ssub.s32 %s21, %s28
      %s35 = sor.u32 %s33, %s34
      %p36 = scmp.eq.s32.totalorder %s35, 0
      %s38 = sadd.s32 %s37, 1
      %s39 = scalar_select %p36, %s37, %s38
      %p42 = pneg %p36
      %p43 = scmp.eq.s32.totalorder %s13, 7
      %p44 = por %p42, %p43
      %p45 = scmp.ne.s32.totalorder %s37, %s40
      %p46 = scmp.eq.s32.totalorder %s13, 0
      %p47 = por %p45, %p46
      %p48 = scmp.ne.s32.totalorder %s37, %s40
      %p49 = scmp.eq.s32.totalorder %s18, 7
      %p50 = por %p48, %p49
      %p51 = scmp.ne.s32.totalorder %s40, %s41
      %p52 = scmp.eq.s32.totalorder %s18, 0
      %p53 = por %p51, %p52
      %p54 = scmp.ne.s32.totalorder %s40, %s41
      %p55 = scmp.eq.s32.totalorder %s19, 7
      %p56 = por %p54, %p55
      %p58 = scmp.ne.s32.totalorder %s41, %s57
      %p59 = scmp.eq.s32.totalorder %s19, 0
      %p60 = por %p58, %p59
      %s62 = sadd.s32 %s61, 1
      %p65 = scmp.eq.s32.totalorder %s13, 7
      %p66 = scmp.ne.s32.totalorder %s61, %s63
      %p67 = scmp.eq.s32.totalorder %s13, 0
      %p68 = por %p66, %p67
      %p69 = scmp.ne.s32.totalorder %s61, %s63
      %p70 = scmp.eq.s32.totalorder %s18, 7
      %p71 = por %p69, %p70
      %p72 = scmp.ne.s32.totalorder %s63, %s64
      %p73 = scmp.eq.s32.totalorder %s18, 0
      %p74 = por %p72, %p73
      %p75 = scmp.ne.s32.totalorder %s63, %s64
      %p76 = scmp.eq.s32.totalorder %s19, 7
      %p77 = por %p75, %p76
      %p79 = scmp.ne.s32.totalorder %s64, %s78
      %p80 = scmp.eq.s32.totalorder %s19, 0
      %p81 = por %p79, %p80
      %s82 = ssub.s32 %s20, %s32
      %p83 = scmp.eq.s32.totalorder %s82, 0
      %s85 = sadd.s32 %s84, 1
      %s86 = scalar_select %p83, %s84, %s85
      %p89 = pneg %p83
      %p90 = scmp.eq.s32.totalorder %s13, 7
      %p91 = por %p89, %p90
      %p92 = scmp.ne.s32.totalorder %s84, %s87
      %p93 = scmp.eq.s32.totalorder %s13, 0
      %p94 = por %p92, %p93
      %p95 = scmp.ne.s32.totalorder %s84, %s87
      %p96 = scmp.eq.s32.totalorder %s18, 7
      %p97 = por %p95, %p96
      %p98 = scmp.ne.s32.totalorder %s87, %s88
      %p99 = scmp.eq.s32.totalorder %s18, 0
      %p100 = por %p98, %p99
      %p101 = scmp.ne.s32.totalorder %s87, %s88
      %p102 = scmp.eq.s32.totalorder %s19, 7
      %p103 = por %p101, %p102
      %p105 = scmp.ne.s32.totalorder %s88, %s104
      %p106 = scmp.eq.s32.totalorder %s19, 0
      %p107 = por %p105, %p106
      %s108 = ssub.s32 %s20, %s32
      %p109 = scmp.eq.s32.totalorder %s108, 0
      %s111 = sadd.s32 %s110, 1
      %s112 = scalar_select %p109, %s110, %s111
      %p115 = pneg %p109
      %p116 = scmp.eq.s32.totalorder %s13, 7
      %p117 = por %p115, %p116
      %p118 = scmp.ne.s32.totalorder %s110, %s113
      %p119 = scmp.eq.s32.totalorder %s13, 0
      %p120 = por %p118, %p119
      %p121 = scmp.ne.s32.totalorder %s110, %s113
      %p122 = scmp.eq.s32.totalorder %s18, 7
      %p123 = por %p121, %p122
      %p124 = scmp.ne.s32.totalorder %s113, %s114
      %p125 = scmp.eq.s32.totalorder %s18, 0
      %p126 = por %p124, %p125
      %p127 = scmp.ne.s32.totalorder %s113, %s114
      %p128 = scmp.eq.s32.totalorder %s19, 7
      %p129 = por %p127, %p128
      %p131 = scmp.ne.s32.totalorder %s114, %s130
      %p132 = scmp.eq.s32.totalorder %s19, 0
      %p133 = por %p131, %p132
      %s134 = ssub.s32 %s21, %s28
      %s135 = ssub.s32 %s20, %s32
      %s136 = sor.u32 %s134, %s135
      %p137 = scmp.eq.s32.totalorder %s136, 0
      %s139 = sadd.s32 %s138, 1
      %s140 = scalar_select %p137, %s138, %s139
      %p143 = pneg %p137
      %p144 = scmp.eq.s32.totalorder %s13, 7
      %p145 = por %p143, %p144
      %p146 = scmp.ne.s32.totalorder %s138, %s141
      %p147 = scmp.eq.s32.totalorder %s13, 0
      %p148 = por %p146, %p147
      %p149 = scmp.ne.s32.totalorder %s138, %s141
      %p150 = scmp.eq.s32.totalorder %s18, 7
      %p151 = por %p149, %p150
      %p152 = scmp.ne.s32.totalorder %s141, %s142
      %p153 = scmp.eq.s32.totalorder %s18, 0
      %p154 = por %p152, %p153
      %p155 = scmp.ne.s32.totalorder %s141, %s142
      %p156 = scmp.eq.s32.totalorder %s19, 7
      %p157 = por %p155, %p156
      %p159 = scmp.ne.s32.totalorder %s142, %s158
      %p160 = scmp.eq.s32.totalorder %s19, 0
      %p161 = por %p159, %p160
      %p162 = scmp.le.s32.totalorder 1, %s13
      %p163 = scmp.lt.s32.totalorder %s13, 9
      %p164 = pnand %p162, %p163
      %p165 = pneg %p164
      // Predicated region
      $region9: #{tpu_custom_call.1} parent=5 // pred_check
        _
      $region10: #{tpu_custom_call.1} parent=5 // pred_check_branch
        %167 = sbr.rel (%p164) target = $region12
      $region11: #{tpu_custom_call.1} parent=5 // pred_region
        %s168 = ssub.s32 %s13, 1
        // Predicated region
        $region13: #{tpu_custom_call.1} parent=11 // pred_check
          %p169 = pneg %p74
        $region14: #{tpu_custom_call.1} parent=11 // pred_check_branch
          %171 = sbr.rel (%p169) target = $region16
        $region15: #{tpu_custom_call.1} parent=11 // pred_region
          _
        $region16: #{tpu_custom_call.1} parent=11 // pred_fallthru
          _
      $region12: #{tpu_custom_call.1} parent=5 // pred_fallthru
        _
      %p172 = scmp.lt.s32.totalorder %s13, 8
      // Predicated region
      $region17: #{tpu_custom_call.1} parent=5 // pred_check
        %p173 = pneg %p172
      $region18: #{tpu_custom_call.1} parent=5 // pred_check_branch
        %175 = sbr.rel (%p173) target = $region20
      $region19: #{tpu_custom_call.1} parent=5 // pred_region
        // Predicated region
        $region21: #{tpu_custom_call.1} parent=19 // pred_check
          %p176 = pneg %p47
        $region22: #{tpu_custom_call.1} parent=19 // pred_check_branch
          %178 = sbr.rel (%p176) target = $region24
        $region23: #{tpu_custom_call.1} parent=19 // pred_region
          %s179 = smul.u32 2, %s21
          %p180 = scmp.lt.s32.totalorder %s20, 1
          %s181 = scalar_select %p180, %s20, 1
          %p182 = scmp.lt.s32.totalorder %s179, 7
          %s183 = scalar_select %p182, %s179, 7
          %s184 = smul.addr %s181, 8
          %s185 = sadd.s32 %s183, %s184
          %s186 = smul.addr %s185, 8
          %s187 = scalar_lea.vmem %s0, %s186
          %s188 = smul.u32 2, %s21
        $region24: #{tpu_custom_call.1} parent=19 // pred_fallthru
          _
        // Predicated region
        $region25: #{tpu_custom_call.1} parent=19 // pred_check
          %p189 = pneg %p94
        $region26: #{tpu_custom_call.1} parent=19 // pred_check_branch
          %191 = sbr.rel (%p189) target = $region28
        $region27: #{tpu_custom_call.1} parent=19 // pred_region
          %s192 = smul.u32 2, %s20
          %p193 = scmp.lt.s32.totalorder %s192, 3
          %s194 = scalar_select %p193, %s192, 3
          %s195 = scalar_lea.vmem %s2, %s194
          %s196 = smul.u32 2, %s20
        $region28: #{tpu_custom_call.1} parent=19 // pred_fallthru
          _
        // Predicated region
        $region29: #{tpu_custom_call.1} parent=19 // pred_check
          %p197 = pneg %p120
        $region30: #{tpu_custom_call.1} parent=19 // pred_check_branch
          %199 = sbr.rel (%p197) target = $region32
        $region31: #{tpu_custom_call.1} parent=19 // pred_region
          %s200 = smul.u32 2, %s20
          %p201 = scmp.lt.s32.totalorder %s200, 3
          %s202 = scalar_select %p201, %s200, 3
          %s203 = scalar_lea.vmem %s3, %s202
          %s204 = smul.u32 2, %s20
        $region32: #{tpu_custom_call.1} parent=19 // pred_fallthru
          _
      $region20: #{tpu_custom_call.1} parent=5 // pred_fallthru
        _
      %p205 = scmp.le.s32.totalorder 1, %s13
      %p206 = scmp.lt.s32.totalorder %s13, 9
      %p207 = pnand %p205, %p206
      %p208 = pneg %p207
      // Predicated region
      $region33: #{tpu_custom_call.1} parent=5 // pred_check
        _
      $region34: #{tpu_custom_call.1} parent=5 // pred_check_branch
        %210 = sbr.rel (%p207) target = $region36
      $region35: #{tpu_custom_call.1} parent=5 // pred_region
        %s211 = ssub.s32 %s13, 1
        %s212 = smul.u32 2, %s23
        %p213 = scmp.lt.s32.totalorder %s22, 1
        %s214 = scalar_select %p213, %s22, 1
        %p215 = scmp.lt.s32.totalorder %s212, 7
        %s216 = scalar_select %p215, %s212, 7
        %s217 = smul.addr %s214, 8
        %s218 = sadd.s32 %s216, %s217
        %s219 = smul.addr %s218, 8
        %s220 = scalar_lea.vmem %s0, %s219
        %p221 = pneg %p53
        %p222 = pneg %p50
        %p223 = pneg %p74
        %p224 = pneg %p71
        %s225 = smul.u32 2, %s22
        %p226 = scmp.lt.s32.totalorder %s225, 3
        %s227 = scalar_select %p226, %s225, 3
        %s228 = scalar_lea.vmem %s2, %s227
        %p229 = pneg %p100
        %p230 = pneg %p97
        %s231 = smul.u32 2, %s22
        %p232 = scmp.lt.s32.totalorder %s231, 3
        %s233 = scalar_select %p232, %s231, 3
        %s234 = scalar_lea.vmem %s3, %s233
        %p235 = pneg %p126
        %p236 = pneg %p123
        %p237 = pneg %p154
        %p238 = pneg %p151
        %s239 = sand.u32 %s141, 1
        %s240 = scalar_lea.sflag [#allocation3], %s239
        %s241 = sand.u32 %s141, 1
        %s242 = smul.addr %s241, 32
        %s243 = scalar_lea.vmem [#allocation2], %s242
        %s244 = smul.u32 2, %s23
        %p245 = scmp.lt.s32.totalorder %s22, 1
        %s246 = scalar_select %p245, %s22, 1
        %p247 = scmp.lt.s32.totalorder %s244, 7
        %s248 = scalar_select %p247, %s244, 7
        %s249 = smul.addr %s246, 8
        %s250 = sadd.s32 %s248, %s249
        %s251 = smul.addr %s250, 8
        %s252 = scalar_lea.vmem %s0, %s251
        %s253 = smul.u32 2, %s23
        %s254 = smul.u32 2, %s22
        %p255 = scmp.lt.s32.totalorder %s254, 3
        %s256 = scalar_select %p255, %s254, 3
        %s257 = scalar_lea.vmem %s2, %s256
        %s258 = smul.u32 2, %s22
        %s259 = smul.u32 2, %s22
        %p260 = scmp.lt.s32.totalorder %s259, 3
        %s261 = scalar_select %p260, %s259, 3
        %s262 = scalar_lea.vmem %s3, %s261
        %s263 = smul.u32 2, %s22
        %s264 = smul.u32 2, %s23
        %s265 = smul.u32 2, %s22
        %v266 = vld [vmem:[%s252] sm:$0xff]
        %v267 = vld [vmem:[%s252 + $0x8] sm:$0xff]
        %v268 = vld [vmem:[%s1] sm:$0xff]
        %v269 = vld [vmem:[%s1 + $0x8] sm:$0xff]
        %v270 = vpack.c.bf16 %v267, %v266
        %v271 = vunpack.c.l.bf16 %v270
        %v272 = vunpack.c.h.bf16 %v270
        %v273 = vsub.f32 %v266, %v271
        %v274 = vsub.f32 %v267, %v272
        %v275 = vpack.c.bf16 %v274, %v273
        %v276 = vunpack.c.l.bf16 %v275
        %v277 = vunpack.c.h.bf16 %v275
        %v278 = vsub.f32 %v273, %v276
        %v279 = vsub.f32 %v274, %v277
        %vm280 = vcmask 64512
        %v282 = vsel %vm280, %v276, 0
        %v285 = vsel %vm280, %v277, 0
        %287 = vmatprep.subr.mxu0 0.0
        %288 = vmatpush1.msra.mxu0 0.0
        %289 = vmatprep.subr.mxu0 0.0
        %290 = vmatpush1.msra.mxu0 0.0
        %291 = vmatprep.subr.mxu0 0.0
        %292 = vmatpush1.msra.mxu0 0.0
        %293 = vmatprep.subr.mxu0 0.0
        %294 = vmatpush1.msra.mxu0 0.0
        %295 = vmatprep.subr.mxu0 0.0
        %296 = vmatpush1.msra.mxu0 0.0
        %297 = vmatprep.subr.mxu0 0.0
        %298 = vmatpush1.msra.mxu0 0.0
        %299 = vmatprep.subr.mxu0 0.0
        %300 = vmatpush1.msra.mxu0 0.0
        %301 = vmatprep.subr.mxu0 0.0
        %302 = vmatpush1.msra.mxu0 0.0
        %303 = vmatprep.subr.mxu0 0.0
        %304 = vmatpush1.msra.mxu0 0.0
        %305 = vmatprep.subr.mxu0 0.0
        %306 = vmatpush1.msra.mxu0 0.0
        %307 = vmatprep.subr.mxu0 0.0
        %308 = vmatpush1.msra.mxu0 0.0
        %309 = vmatprep.subr.mxu0 0.0
        %310 = vmatpush1.msra.mxu0 0.0
        %311 = vmatprep.subr.mxu0 0.0
        %312 = vmatpush1.msra.mxu0 0.0
        %313 = vmatprep.subr.mxu0 0.0
        %314 = vmatpush1.msra.mxu0 0.0
        %315 = vmatprep.subr.mxu0 0.0
        %316 = vmatpush1.msra.mxu0 0.0
        %317 = vmatprep.subr.mxu0 %v269
        %318 = vmatpush1.msra.mxu0 %v268
        %319 = vmatprep.subr.mxu0 0.0
        %320 = vmatpush2.msra.mxu0 0.0
        %321 = vmatprep.subr.mxu0 0.0
        %322 = vmatpush2.msra.mxu0 0.0
        %323 = vmatprep.subr.mxu0 0.0
        %324 = vmatpush2.msra.mxu0 0.0
        %325 = vmatprep.subr.mxu0 0.0
        %326 = vmatpush2.msra.mxu0 0.0
        %327 = vmatprep.subr.mxu0 0.0
        %328 = vmatpush2.msra.mxu0 0.0
        %329 = vmatprep.subr.mxu0 0.0
        %330 = vmatpush2.msra.mxu0 0.0
        %331 = vmatprep.subr.mxu0 0.0
        %332 = vmatpush2.msra.mxu0 0.0
        %333 = vmatprep.subr.mxu0 0.0
        %334 = vmatpush2.msra.mxu0 0.0
        %335 = vmatprep.subr.mxu0 0.0
        %336 = vmatpush2.msra.mxu0 0.0
        %337 = vmatprep.subr.mxu0 0.0
        %338 = vmatpush2.msra.mxu0 0.0
        %339 = vmatprep.subr.mxu0 0.0
        %340 = vmatpush2.msra.mxu0 0.0
        %341 = vmatprep.subr.mxu0 0.0
        %342 = vmatpush2.msra.mxu0 0.0
        %343 = vmatprep.subr.mxu0 0.0
        %344 = vmatpush2.msra.mxu0 0.0
        %345 = vmatprep.subr.mxu0 0.0
        %346 = vmatpush2.msra.mxu0 0.0
        %347 = vmatprep.subr.mxu0 0.0
        %348 = vmatpush2.msra.mxu0 0.0
        %349 = vmatprep.subr.mxu0 0.0
        %350 = vmatpush2.msra.mxu0 0.0
        %351 = vmatprep.mubr.f32.mxu0 0.0
        %352 = vmatmul.mubr.f32.gmra.mxu0 %v282
        %v353 = vpop.f32.mrf.mxu0
        %v354 = vadd.f32 0.0, %v353
        %v355 = vpop.f32.mrf.mxu0
        %v356 = vadd.f32 0.0, %v355
        %357 = vmatprep.mubr.f32.mxu0 0.0
        %358 = vmatmul.mubr.f32.gmra.mxu0 %v285
        %v359 = vpop.f32.mrf.mxu0
        %v360 = vadd.f32 0.0, %v359
        %v361 = vpop.f32.mrf.mxu0
        %v362 = vadd.f32 0.0, %v361
        %363 = vdwg.mxu0
        %v365 = vsel %vm280, %v271, 0
        %v368 = vsel %vm280, %v272, 0
        %370 = vmatprep.subr.mxu0 0.0
        %371 = vmatpush1.msra.mxu0 0.0
        %372 = vmatprep.subr.mxu0 0.0
        %373 = vmatpush1.msra.mxu0 0.0
        %374 = vmatprep.subr.mxu0 0.0
        %375 = vmatpush1.msra.mxu0 0.0
        %376 = vmatprep.subr.mxu0 0.0
        %377 = vmatpush1.msra.mxu0 0.0
        %378 = vmatprep.subr.mxu0 0.0
        %379 = vmatpush1.msra.mxu0 0.0
        %380 = vmatprep.subr.mxu0 0.0
        %381 = vmatpush1.msra.mxu0 0.0
        %382 = vmatprep.subr.mxu0 0.0
        %383 = vmatpush1.msra.mxu0 0.0
        %384 = vmatprep.subr.mxu0 0.0
        %385 = vmatpush1.msra.mxu0 0.0
        %386 = vmatprep.subr.mxu0 0.0
        %387 = vmatpush1.msra.mxu0 0.0
        %388 = vmatprep.subr.mxu0 0.0
        %389 = vmatpush1.msra.mxu0 0.0
        %390 = vmatprep.subr.mxu0 0.0
        %391 = vmatpush1.msra.mxu0 0.0
        %392 = vmatprep.subr.mxu0 0.0
        %393 = vmatpush1.msra.mxu0 0.0
        %394 = vmatprep.subr.mxu0 0.0
        %395 = vmatpush1.msra.mxu0 0.0
        %396 = vmatprep.subr.mxu0 0.0
        %397 = vmatpush1.msra.mxu0 0.0
        %398 = vmatprep.subr.mxu0 0.0
        %399 = vmatpush1.msra.mxu0 0.0
        %400 = vmatprep.subr.mxu0 %v269
        %401 = vmatpush1.msra.mxu0 %v268
        %402 = vmatprep.subr.mxu0 0.0
        %403 = vmatpush2.msra.mxu0 0.0
        %404 = vmatprep.subr.mxu0 0.0
        %405 = vmatpush2.msra.mxu0 0.0
        %406 = vmatprep.subr.mxu0 0.0
        %407 = vmatpush2.msra.mxu0 0.0
        %408 = vmatprep.subr.mxu0 0.0
        %409 = vmatpush2.msra.mxu0 0.0
        %410 = vmatprep.subr.mxu0 0.0
        %411 = vmatpush2.msra.mxu0 0.0
        %412 = vmatprep.subr.mxu0 0.0
        %413 = vmatpush2.msra.mxu0 0.0
        %414 = vmatprep.subr.mxu0 0.0
        %415 = vmatpush2.msra.mxu0 0.0
        %416 = vmatprep.subr.mxu0 0.0
        %417 = vmatpush2.msra.mxu0 0.0
        %418 = vmatprep.subr.mxu0 0.0
        %419 = vmatpush2.msra.mxu0 0.0
        %420 = vmatprep.subr.mxu0 0.0
        %421 = vmatpush2.msra.mxu0 0.0
        %422 = vmatprep.subr.mxu0 0.0
        %423 = vmatpush2.msra.mxu0 0.0
        %424 = vmatprep.subr.mxu0 0.0
        %425 = vmatpush2.msra.mxu0 0.0
        %426 = vmatprep.subr.mxu0 0.0
        %427 = vmatpush2.msra.mxu0 0.0
        %428 = vmatprep.subr.mxu0 0.0
        %429 = vmatpush2.msra.mxu0 0.0
        %430 = vmatprep.subr.mxu0 0.0
        %431 = vmatpush2.msra.mxu0 0.0
        %432 = vmatprep.subr.mxu0 0.0
        %433 = vmatpush2.msra.mxu0 0.0
        %434 = vmatprep.mubr.f32.mxu0 0.0
        %435 = vmatmul.mubr.f32.gmra.mxu0 %v365
        %v436 = vpop.f32.mrf.mxu0
        %v437 = vadd.f32 %v354, %v436
        %v438 = vpop.f32.mrf.mxu0
        %v439 = vadd.f32 %v356, %v438
        %440 = vmatprep.mubr.f32.mxu0 0.0
        %441 = vmatmul.mubr.f32.gmra.mxu0 %v368
        %v442 = vpop.f32.mrf.mxu0
        %v443 = vadd.f32 %v360, %v442
        %v444 = vpop.f32.mrf.mxu0
        %v445 = vadd.f32 %v362, %v444
        %446 = vdwg.mxu0
        %v448 = vsel %vm280, %v278, 0
        %v451 = vsel %vm280, %v279, 0
        %453 = vmatprep.subr.mxu0 0.0
        %454 = vmatpush1.msra.mxu0 0.0
        %455 = vmatprep.subr.mxu0 0.0
        %456 = vmatpush1.msra.mxu0 0.0
        %457 = vmatprep.subr.mxu0 0.0
        %458 = vmatpush1.msra.mxu0 0.0
        %459 = vmatprep.subr.mxu0 0.0
        %460 = vmatpush1.msra.mxu0 0.0
        %461 = vmatprep.subr.mxu0 0.0
        %462 = vmatpush1.msra.mxu0 0.0
        %463 = vmatprep.subr.mxu0 0.0
        %464 = vmatpush1.msra.mxu0 0.0
        %465 = vmatprep.subr.mxu0 0.0
        %466 = vmatpush1.msra.mxu0 0.0
        %467 = vmatprep.subr.mxu0 0.0
        %468 = vmatpush1.msra.mxu0 0.0
        %469 = vmatprep.subr.mxu0 0.0
        %470 = vmatpush1.msra.mxu0 0.0
        %471 = vmatprep.subr.mxu0 0.0
        %472 = vmatpush1.msra.mxu0 0.0
        %473 = vmatprep.subr.mxu0 0.0
        %474 = vmatpush1.msra.mxu0 0.0
        %475 = vmatprep.subr.mxu0 0.0
        %476 = vmatpush1.msra.mxu0 0.0
        %477 = vmatprep.subr.mxu0 0.0
        %478 = vmatpush1.msra.mxu0 0.0
        %479 = vmatprep.subr.mxu0 0.0
        %480 = vmatpush1.msra.mxu0 0.0
        %481 = vmatprep.subr.mxu0 0.0
        %482 = vmatpush1.msra.mxu0 0.0
        %483 = vmatprep.subr.mxu0 %v269
        %484 = vmatpush1.msra.mxu0 %v268
        %485 = vmatprep.subr.mxu0 0.0
        %486 = vmatpush2.msra.mxu0 0.0
        %487 = vmatprep.subr.mxu0 0.0
        %488 = vmatpush2.msra.mxu0 0.0
        %489 = vmatprep.subr.mxu0 0.0
        %490 = vmatpush2.msra.mxu0 0.0
        %491 = vmatprep.subr.mxu0 0.0
        %492 = vmatpush2.msra.mxu0 0.0
        %493 = vmatprep.subr.mxu0 0.0
        %494 = vmatpush2.msra.mxu0 0.0
        %495 = vmatprep.subr.mxu0 0.0
        %496 = vmatpush2.msra.mxu0 0.0
        %497 = vmatprep.subr.mxu0 0.0
        %498 = vmatpush2.msra.mxu0 0.0
        %499 = vmatprep.subr.mxu0 0.0
        %500 = vmatpush2.msra.mxu0 0.0
        %501 = vmatprep.subr.mxu0 0.0
        %502 = vmatpush2.msra.mxu0 0.0
        %503 = vmatprep.subr.mxu0 0.0
        %504 = vmatpush2.msra.mxu0 0.0
        %505 = vmatprep.subr.mxu0 0.0
        %506 = vmatpush2.msra.mxu0 0.0
        %507 = vmatprep.subr.mxu0 0.0
        %508 = vmatpush2.msra.mxu0 0.0
        %509 = vmatprep.subr.mxu0 0.0
        %510 = vmatpush2.msra.mxu0 0.0
        %511 = vmatprep.subr.mxu0 0.0
        %512 = vmatpush2.msra.mxu0 0.0
        %513 = vmatprep.subr.mxu0 0.0
        %514 = vmatpush2.msra.mxu0 0.0
        %515 = vmatprep.subr.mxu0 0.0
        %516 = vmatpush2.msra.mxu0 0.0
        %517 = vmatprep.mubr.f32.mxu0 0.0
        %518 = vmatmul.mubr.f32.gmra.mxu0 %v448
        %v519 = vpop.f32.mrf.mxu0
        %v520 = vadd.f32 0.0, %v519
        %v521 = vpop.f32.mrf.mxu0
        %v522 = vadd.f32 0.0, %v521
        %523 = vmatprep.mubr.f32.mxu0 0.0
        %524 = vmatmul.mubr.f32.gmra.mxu0 %v451
        %v525 = vpop.f32.mrf.mxu0
        %v526 = vadd.f32 0.0, %v525
        %v527 = vpop.f32.mrf.mxu0
        %v528 = vadd.f32 0.0, %v527
        %529 = vdwg.mxu0
        %v530 = vadd.f32 %v437, %v520
        %v531 = vadd.f32 %v439, %v522
        %v532 = vadd.f32 %v443, %v526
        %v533 = vadd.f32 %v445, %v528
        %v534 = vld [vmem:[%s257] sm:$0x3]
        %v536 = vlaneseq
        %v537 = vshrl.u32 %v536, 7
        %v538 = vsub.s32 0, %v537
        %v539 = vrot.slane %v534, %v538
        %v540 = vlaneseq
        %v541 = vshrl.u32 %v540, 7
        %v542 = vsub.s32 1, %v541
        %v543 = vrot.slane %v534, %v542
        %v546 = vmul.f32 %v530, %v539
        %v547 = vmul.f32 %v531, %v543
        %v548 = vmul.f32 %v532, %v539
        %v549 = vmul.f32 %v533, %v543
        %v550 = vld [vmem:[%s262] sm:$0x3]
        %v552 = vlaneseq
        %v553 = vshrl.u32 %v552, 7
        %v554 = vsub.s32 0, %v553
        %v555 = vrot.slane %v550, %v554
        %v556 = vlaneseq
        %v557 = vshrl.u32 %v556, 7
        %v558 = vsub.s32 1, %v557
        %v559 = vrot.slane %v550, %v558
        %v562 = vadd.f32 %v546, %v555
        %v563 = vadd.f32 %v547, %v559
        %v564 = vadd.f32 %v548, %v555
        %v565 = vadd.f32 %v549, %v559
        %566 = vst [vmem:[%s243] sm:$0xff] %v562
        %567 = vst [vmem:[%s243 + $0x8] sm:$0xff] %v563
        %568 = vst [vmem:[%s243 + $0x10] sm:$0xff] %v564
        %569 = vst [vmem:[%s243 + $0x18] sm:$0xff] %v565
        %s570 = sand.u32 %s141, 1
        %s571 = scalar_lea.sflag [#allocation3], %s570
        %s572 = sand.u32 %s141, 1
        %s573 = smul.addr %s572, 32
        %s574 = scalar_lea.vmem [#allocation2], %s573
        // Predicated region
        $region37: #{tpu_custom_call.1} parent=35 // pred_check
          %p575 = pneg %p151
        $region38: #{tpu_custom_call.1} parent=35 // pred_check_branch
          %577 = sbr.rel (%p575) target = $region40
        $region39: #{tpu_custom_call.1} parent=35 // pred_region
          %s578 = smul.u32 2, %s23
          %s579 = smul.u32 2, %s22
          %s581 = ssub.s32 512, 512
          %582 = vsyncadd %s571, %s581
          %s583 = smul.addr %s578, 4
          %s584 = sadd.s32 %s579, %s583
          %s585 = smul.addr %s584, 128
          %s586 = scalar_lea.hbm %s4, %s585
          %s587 = sshll.u32 %s574, 4
          %s588 = int_to_ptr.vmem [resolvable:$true] %s587
          %593 = dma.vmem_to_hbm [thread:$0]  %s588, 512, %s586, %s571, 256, 512, 16
        $region40: #{tpu_custom_call.1} parent=35 // pred_fallthru
          _
      $region36: #{tpu_custom_call.1} parent=5 // pred_fallthru
        _
      %p594 = scmp.le.s32.totalorder 2, %s13
      // Predicated region
      $region41: #{tpu_custom_call.1} parent=5 // pred_check
        %p595 = pneg %p594
      $region42: #{tpu_custom_call.1} parent=5 // pred_check_branch
        %597 = sbr.rel (%p595) target = $region44
      $region43: #{tpu_custom_call.1} parent=5 // pred_region
        %s598 = ssub.s32 %s13, 2
        // Predicated region
        $region45: #{tpu_custom_call.1} parent=43 // pred_check
          %p599 = pneg %p157
        $region46: #{tpu_custom_call.1} parent=43 // pred_check_branch
          %601 = sbr.rel (%p599) target = $region48
        $region47: #{tpu_custom_call.1} parent=43 // pred_region
          %s602 = sand.u32 %s142, 1
          %s603 = scalar_lea.sflag [#allocation3], %s602
          %s604 = sand.u32 %s142, 1
          %s605 = smul.addr %s604, 32
          %s606 = scalar_lea.vmem [#allocation2], %s605
          %607 = dma.done %s603, 512
        $region48: #{tpu_custom_call.1} parent=43 // pred_fallthru
          _
      $region44: #{tpu_custom_call.1} parent=5 // pred_fallthru
        _
    $region6: #{tpu_custom_call.1} parent=1 // loop_footer
      %s17 = sadd.s32 1, %s13
    $region7: #{tpu_custom_call.1} parent=1 // loop_footer_branch
      %12 = sbr.rel target = $region3
    $region8: #{tpu_custom_call.1} parent=1 // loop_exit
      _
    %608 = vsyncpa [#allocation3], 1
    %s609 = scalar_lea.sflag [#allocation3], 1
    %610 = vsyncpa %s609, 1

</llo_original>
